<compile_context>
chip_gen: v5e
topology: v5e:2x2
jax: 0.10.0
libtpu: 0.0.40
codegen_flags: <defaults>
</compile_context>

<pallas_src>
import jax
import jax.numpy as jnp
from jax.experimental import pallas as pl
from jax.experimental.pallas import tpu as pltpu

IN_DIM = 103     # nn.Linear in_features
OUT_DIM = 200    # nn.Linear out_features


def _round_up(v, mult):
    return ((v + mult - 1) // mult) * mult


def old_front_kernel(x_ref, w_ref, b_ref, o_ref):
    # h = x @ W + b   (f32 accumulate on the MXU; K=103 / N=200 pad internally)
    h = jnp.dot(x_ref[...], w_ref[...], preferred_element_type=jnp.float32)
    h = h + b_ref[...]
    # Dropout (inference) = identity; ReLU fused on the VPU.
    o_ref[...] = jnp.maximum(h, 0.0).astype(o_ref.dtype)


def old_front_forward(x, w, b, *, tm=1024):
    """y = relu(x @ w + b).

    x: (m, IN_DIM); w: (IN_DIM, OUT_DIM) — i.e. torch weight transposed ONCE at
    init; b: (OUT_DIM,). Returns (m, OUT_DIM), same dtype as x.
    """
    m = x.shape[0]

    # Batch tile: full batch if it fits in one tile, otherwise at least 2 grid
    # blocks (so v7x's two TensorCores both get work), multiple of 8 sublanes.
    if m <= tm:
        tm_eff = m
    else:
        tm_eff = min(tm, _round_up(pl.cdiv(m, 2), 8))
    grid_m = pl.cdiv(m, tm_eff)

    b2d = b.reshape(1, OUT_DIM)   # metadata-only reshape, negligible

    cost = pl.CostEstimate(
        flops=2 * m * IN_DIM * OUT_DIM,
        transcendentals=0,
        bytes_accessed=4 * (m * IN_DIM + IN_DIM * OUT_DIM + OUT_DIM + m * OUT_DIM),
    )

    return pl.pallas_call(
        old_front_kernel,
        out_shape=jax.ShapeDtypeStruct((m, OUT_DIM), x.dtype),
        grid=(grid_m,),
        in_specs=[
            # activations: streamed over the batch axis (double-buffered)
            pl.BlockSpec((tm_eff, IN_DIM), lambda i: (i, 0)),
            # weights / bias: constant index_map -> DMA'd once, resident
            pl.BlockSpec((IN_DIM, OUT_DIM), lambda i: (0, 0)),
            pl.BlockSpec((1, OUT_DIM), lambda i: (0, 0)),
        ],
        out_specs=pl.BlockSpec((tm_eff, OUT_DIM), lambda i: (i, 0)),
        compiler_params=pltpu.CompilerParams(
            dimension_semantics=("parallel",),   # megacore-shardable batch axis
        ),
        cost_estimate=cost,
    )(x, w, b2d)


if __name__ == "__main__":
    key = jax.random.PRNGKey(0)
    k_x, k_w, k_b = jax.random.split(key, 3)

    batch = 8
    x = jax.random.normal(k_x, (batch, IN_DIM), jnp.float32)

    # Deterministic synthetic Linear params (Kaiming-uniform-ish, like torch).
    # Stored pre-transposed (IN_DIM, OUT_DIM) — the one-time init-side layout.
    bound = 1.0 / (IN_DIM ** 0.5)
    w = jax.random.uniform(k_w, (IN_DIM, OUT_DIM), jnp.float32, -bound, bound)
    b = jax.random.uniform(k_b, (OUT_DIM,), jnp.float32, -bound, bound)

    y = jax.block_until_ready(old_front_forward(x, w, b))

    # Pure-JAX reference: relu(x @ W + b) (dropout is identity at inference).
    ref = jnp.maximum(x @ w + b, 0.0)
    assert y.shape == (batch, OUT_DIM)
    assert jnp.allclose(y, ref, atol=1e-5, rtol=1e-5)

    print("KERNEL_OK")
</pallas_src>

<mosaic_0001>
module attributes {stable_mosaic.version = 11 : i64} {
  func.func @old_front_kernel(%arg0: i32, %arg1: memref<8x103xf32, #tpu.memory_space<vmem>>, %arg2: memref<103x200xf32, #tpu.memory_space<vmem>>, %arg3: memref<1x200xf32, #tpu.memory_space<vmem>>, %arg4: memref<8x200xf32, #tpu.memory_space<vmem>>) attributes {dimension_semantics = [#tpu.dimension_semantics<parallel>], iteration_bounds = array<i64: 1>, scalar_prefetch = 0 : i64, scratch_operands = 0 : i64, tpu.core_type = #tpu.core_type<tc>, window_params = [{transform_indices = @transform_0, window_bounds = array<i64: 8, 103>}, {pipeline_mode = #tpu.pipeline_mode<synchronous>, transform_indices = @transform_1, window_bounds = array<i64: 103, 200>}, {pipeline_mode = #tpu.pipeline_mode<synchronous>, transform_indices = @transform_2, window_bounds = array<i64: 1, 200>}, {transform_indices = @transform_3, window_bounds = array<i64: 8, 200>}]} {
    %c0 = arith.constant 0 : index
    %c0_0 = arith.constant 0 : index
    %0 = vector.load %arg1[%c0, %c0_0] : memref<8x103xf32, #tpu.memory_space<vmem>>, vector<8x103xf32>
    %c0_1 = arith.constant 0 : index
    %c0_2 = arith.constant 0 : index
    %1 = vector.load %arg2[%c0_1, %c0_2] : memref<103x200xf32, #tpu.memory_space<vmem>>, vector<103x200xf32>
    %cst = arith.constant dense<0.000000e+00> : vector<8x200xf32>
    %2 = tpu.matmul %0, %1, %cst {dimension_numbers = #tpu.dot_dimension_numbers<[1], [0], [0], [1], [0, 0, 1, 1], [], []>} : vector<8x103xf32>, vector<103x200xf32>, vector<8x200xf32> -> vector<8x200xf32>
    %c0_3 = arith.constant 0 : index
    %c0_4 = arith.constant 0 : index
    %3 = vector.load %arg3[%c0_3, %c0_4] : memref<1x200xf32, #tpu.memory_space<vmem>>, vector<1x200xf32>
    %4 = vector.broadcast %3 : vector<1x200xf32> to vector<8x200xf32>
    %5 = arith.addf %2, %4 : vector<8x200xf32>
    %cst_5 = arith.constant 0.000000e+00 : f32
    %6 = vector.broadcast %cst_5 : f32 to vector<8x200xf32>
    %7 = arith.maximumf %5, %6 : vector<8x200xf32>
    %c0_6 = arith.constant 0 : index
    %c0_7 = arith.constant 0 : index
    %8 = vector.load %arg4[%c0_6, %c0_7] : memref<8x200xf32, #tpu.memory_space<vmem>>, vector<8x200xf32>
    tpu.vector_store %arg4[%c0_6, %c0_7], %7 {strides = array<i32>} : memref<8x200xf32, #tpu.memory_space<vmem>>, vector<8x200xf32>,
    return
  }
  func.func @transform_0(%arg0: i32) -> (i32, i32) {
    %c0_i32 = arith.constant 0 : i32
    %c0_i32_0 = arith.constant 0 : i32
    return %arg0, %c0_i32 : i32, i32
  }
  func.func @transform_1(%arg0: i32) -> (i32, i32) {
    %c0_i32 = arith.constant 0 : i32
    %c0_i32_0 = arith.constant 0 : i32
    %c0_i32_1 = arith.constant 0 : i32
    return %c0_i32, %c0_i32_0 : i32, i32
  }
  func.func @transform_2(%arg0: i32) -> (i32, i32) {
    %c0_i32 = arith.constant 0 : i32
    %c0_i32_0 = arith.constant 0 : i32
    %c0_i32_1 = arith.constant 0 : i32
    return %c0_i32, %c0_i32_0 : i32, i32
  }
  func.func @transform_3(%arg0: i32) -> (i32, i32) {
    %c0_i32 = arith.constant 0 : i32
    %c0_i32_0 = arith.constant 0 : i32
    return %arg0, %c0_i32 : i32, i32
  }
}

</mosaic_0001>

<llo_original>
// kernel: tpu_custom_call.1
$region0: #{tpu_custom_call.1}
  #allocation0 [shape = 'u32[]', space=smem, size = 0x4, offset = 0x4, fixed_abs, tag = 'smem constant byte address 0x4 - core index']
  #allocation1 [shape = 'u32[72,128]{1,0:T(1,128)}', space=vmem, size = 0x9000, scoped, tag = 'internal scratch']
  %s0 = inlined_call_operand.vmem [shape: f32[8,103], index: 0, kind: input, shape index: {}]
  %s1 = inlined_call_operand.vmem [shape: f32[103,200], index: 1, kind: input, shape index: {}]
  %s2 = inlined_call_operand.vmem [shape: f32[1,200], index: 2, kind: input, shape index: {}]
  %s3 = inlined_call_operand.hbm [shape: f32[8,200], index: 3, kind: output, shape index: {}]
  %s4 = sld [smem:[#allocation0]]
  $region22: #{tpu_custom_call.1} parent=0
    _
  %s6 = ssub.s32 1, %s4
  %s7 = scalar_select 0, %s6, %s4
  $region1: #{tpu_custom_call.1} parent=0
    #allocation2 [shape = 'u8[8192]{0}', space=vmem, size = 0x2000, scoped, tag = 'output window, operand 0, single buffered']
    #allocation3 [shape = 's32[1]{0}', space=sflag, size = 0x4, scoped, tag = 'scoped memory for tpu_custom_call.1']
    %8 = vsyncpa [#allocation3], 0
    // Predicated region
    $region2: #{tpu_custom_call.1} parent=1 // pred_check
      _
    $region3: #{tpu_custom_call.1} parent=1 // pred_check_branch
      %10 = sbr.rel (0) target = $region5
    $region4: #{tpu_custom_call.1} parent=1 // pred_region
      _
    $region5: #{tpu_custom_call.1} parent=1 // pred_fallthru
      _
    // Predicated region
    $region6: #{tpu_custom_call.1} parent=1 // pred_check
      _
    $region7: #{tpu_custom_call.1} parent=1 // pred_check_branch
      %12 = sbr.rel (0) target = $region9
    $region8: #{tpu_custom_call.1} parent=1 // pred_region
      _
    $region9: #{tpu_custom_call.1} parent=1 // pred_fallthru
      _
    // Predicated region
    $region10: #{tpu_custom_call.1} parent=1 // pred_check
      _
    $region11: #{tpu_custom_call.1} parent=1 // pred_check_branch
      %14 = sbr.rel (0) target = $region13
    $region12: #{tpu_custom_call.1} parent=1 // pred_region
      _
    $region13: #{tpu_custom_call.1} parent=1 // pred_fallthru
      _
    %v15 = vld [vmem:[%s0] sm:$0xff]
    %v16 = vld [vmem:[%s1] sm:$0xff]
    %v17 = vld [vmem:[%s1 + $0x8] sm:$0xff]
    %v18 = vld [vmem:[%s1 + $0x10] sm:$0xff]
    %v19 = vld [vmem:[%s1 + $0x18] sm:$0xff]
    %v20 = vld [vmem:[%s1 + $0x20] sm:$0xff]
    %v21 = vld [vmem:[%s1 + $0x28] sm:$0xff]
    %v22 = vld [vmem:[%s1 + $0x30] sm:$0xff]
    %v23 = vld [vmem:[%s1 + $0x38] sm:$0xff]
    %v24 = vld [vmem:[%s1 + $0x40] sm:$0xff]
    %v25 = vld [vmem:[%s1 + $0x48] sm:$0xff]
    %v26 = vld [vmem:[%s1 + $0x50] sm:$0xff]
    %v27 = vld [vmem:[%s1 + $0x58] sm:$0xff]
    %v28 = vld [vmem:[%s1 + $0x60] sm:$0xff]
    %v29 = vld [vmem:[%s1 + $0x68] sm:$0xff]
    %v30 = vld [vmem:[%s1 + $0x70] sm:$0xff]
    %v31 = vld [vmem:[%s1 + $0x78] sm:$0xff]
    %v32 = vld [vmem:[%s1 + $0x80] sm:$0xff]
    %v33 = vld [vmem:[%s1 + $0x88] sm:$0xff]
    %v34 = vld [vmem:[%s1 + $0x90] sm:$0xff]
    %v35 = vld [vmem:[%s1 + $0x98] sm:$0xff]
    %v36 = vld [vmem:[%s1 + $0xa0] sm:$0xff]
    %v37 = vld [vmem:[%s1 + $0xa8] sm:$0xff]
    %v38 = vld [vmem:[%s1 + $0xb0] sm:$0xff]
    %v39 = vld [vmem:[%s1 + $0xb8] sm:$0xff]
    %v40 = vld [vmem:[%s1 + $0xc0] sm:$0x7f]
    %v41 = vld [vmem:[%s1 + $0xc8] sm:$0x7f]
    %v42 = vld [vmem:[%s2] sm:$0x3]
    %v44 = vperm.slane %v42, 0
    %v45 = vperm.slane %v42, 1
    %vm48 = vcmask 842752
    %v50 = vsel %vm48, %v15, 0
    %vm52 = vcmask 1046528
    %v54 = vsel %vm52, %v40, 0
    %v57 = vsel %vm52, %v41, 0
    %59 = vmatpush.msra.mxu0 0.0
    %60 = vmatpush.msra.mxu0 0.0
    %61 = vmatpush.msra.mxu0 0.0
    %62 = vmatpush.msra.mxu0 %v54
    %63 = vmatpush.msra.mxu0 %v38
    %64 = vmatpush.msra.mxu0 %v36
    %65 = vmatpush.msra.mxu0 %v34
    %66 = vmatpush.msra.mxu0 %v32
    %67 = vmatpush.msra.mxu0 %v30
    %68 = vmatpush.msra.mxu0 %v28
    %69 = vmatpush.msra.mxu0 %v26
    %70 = vmatpush.msra.mxu0 %v24
    %71 = vmatpush.msra.mxu0 %v22
    %72 = vmatpush.msra.mxu0 %v20
    %73 = vmatpush.msra.mxu0 %v18
    %74 = vmatpush.msra.mxu0 %v16
    %75 = vmatmul.f32.gmra.mxu0 %v50
    %v76 = vpop.f32.mrf.mxu0
    %v77 = vadd.f32 %v44, %v76
    %78 = vdwg.mxu0
    %79 = vmatpush.msra.mxu0 0.0
    %80 = vmatpush.msra.mxu0 0.0
    %81 = vmatpush.msra.mxu0 0.0
    %82 = vmatpush.msra.mxu0 %v57
    %83 = vmatpush.msra.mxu0 %v39
    %84 = vmatpush.msra.mxu0 %v37
    %85 = vmatpush.msra.mxu0 %v35
    %86 = vmatpush.msra.mxu0 %v33
    %87 = vmatpush.msra.mxu0 %v31
    %88 = vmatpush.msra.mxu0 %v29
    %89 = vmatpush.msra.mxu0 %v27
    %90 = vmatpush.msra.mxu0 %v25
    %91 = vmatpush.msra.mxu0 %v23
    %92 = vmatpush.msra.mxu0 %v21
    %93 = vmatpush.msra.mxu0 %v19
    %94 = vmatpush.msra.mxu0 %v17
    %95 = vmatmul.f32.gmra.mxu0 %v50
    %v96 = vpop.f32.mrf.mxu0
    %v97 = vadd.f32 %v45, %v96
    %98 = vdwg.mxu0
    %v99 = vmax.f32 %v77, 0.0
    %v100 = vmax.f32 %v97, 0.0
    %101 = vst [vmem:[#allocation2] sm:$0xff] %v99
    %vm102 = vcmask 588800
    %103 = vst.msk [vmem:[#allocation2 + $0x8] sm:$0xff] %vm102, %v100
    // Predicated region
    $region14: #{tpu_custom_call.1} parent=1 // pred_check
      _
    $region15: #{tpu_custom_call.1} parent=1 // pred_check_branch
      %105 = sbr.rel (0) target = $region17
    $region16: #{tpu_custom_call.1} parent=1 // pred_region
      %107 = vsyncadd [#allocation3], 0
      %s109 = sshll.u32 [#allocation2], 4
      %s110 = int_to_ptr.vmem [resolvable:$true] %s109
      %s111 = sshll.u32 %s3, 4
      %s112 = int_to_ptr.hbm [resolvable:$true] %s111
      %114 = dma.vmem_to_hbm [thread:$0]  %s110, 256, %s112, [#allocation3]
    $region17: #{tpu_custom_call.1} parent=1 // pred_fallthru
      _
    // Predicated region
    $region18: #{tpu_custom_call.1} parent=1 // pred_check
      _
    $region19: #{tpu_custom_call.1} parent=1 // pred_check_branch
      %116 = sbr.rel (0) target = $region21
    $region20: #{tpu_custom_call.1} parent=1 // pred_region
      %118 = dma.done [#allocation3], 256
    $region21: #{tpu_custom_call.1} parent=1 // pred_fallthru
      _
    %119 = vsyncpa [#allocation3], 1

</llo_original>
